<compile_context>
chip_gen: v7x
topology: tpu7x:2x2x1
jax: 0.10.0
libtpu: 0.0.40
codegen_flags: <defaults>
</compile_context>

<pallas_src>
import math

import numpy as np
import jax
import jax.numpy as jnp
from jax.experimental import pallas as pl
from jax.experimental.pallas import tpu as pltpu

MAX_LEN = 5000


def build_pe_table(d_model: int, decay_rate: float) -> jnp.ndarray:
    """Sinusoidal PE with exponential decay, shape (MAX_LEN, d_model), f32."""
    assert d_model % 2 == 0, "PositionalEncoding assumes an even d_model"
    position = np.arange(0, MAX_LEN, dtype=np.float32)[:, None]               # (L, 1)
    div_term = np.exp(
        np.arange(0, d_model, 2, dtype=np.float32) * (-math.log(10000.0) / d_model)
    )                                                                          # (d_model/2,)
    decay = np.exp(-decay_rate * position)                                     # (L, 1)
    pe = np.zeros((MAX_LEN, d_model), dtype=np.float32)
    pe[:, 0::2] = np.sin(position * div_term) * decay
    pe[:, 1::2] = np.cos(position * div_term) * decay
    return jnp.asarray(pe)


def _round_up(n: int, m: int) -> int:
    return ((n + m - 1) // m) * m


def _vmem_capacity_bytes() -> int:
    try:
        return int(pltpu.get_tpu_info().vmem_capacity_bytes)
    except Exception:
        return 64 * 2**20  # conservative: v7x per-TensorCore VMEM


def _fma_kernel_3d(x_ref, w_ref, pe_ref, o_ref):
    # x_ref : (tS, B)    raw series values (compute dtype)
    # w_ref : (1, D)     encoder weight column * sqrt(d_model)
    # pe_ref: (tS, D)    pe rows + bias*sqrt(d_model)  (batch-invariant)
    # o_ref : (tS, B, D)
    x = x_ref[...]
    w = w_ref[...]
    pe = pe_ref[...]
    o_ref[...] = (x[:, :, None] * w[None, :, :] + pe[:, None, :]).astype(o_ref.dtype)


def _fma_kernel_2d(x_ref, w_ref, pe_ref, o_ref):
    # x_ref : (tR, 1)    flattened (seq*batch) series values
    # w_ref : (1, D)     encoder weight column * sqrt(d_model)
    # pe_ref: (tR, D)    pe row (+ scaled bias), repeated per batch element
    # o_ref : (tR, D)    lane/sublane-dense output slab
    o_ref[...] = (x_ref[...] * w_ref[...] + pe_ref[...]).astype(o_ref.dtype)


def encoder_posenc_forward(x: jnp.ndarray,
                           enc_w: jnp.ndarray,
                           enc_b: jnp.ndarray,
                           pe: jnp.ndarray,
                           *,
                           out_dtype=None,
                           seq_block: int | None = None) -> jnp.ndarray:
    """x: (S, B, 1); enc_w: (D, 1); enc_b: (D,); pe: (MAX_LEN, D). Returns (S, B, D)."""
    S, B, in_feat = x.shape
    assert in_feat == 1, "TransformerModel.encoder is nn.Linear(in_features=1, ...)"
    max_len, D = pe.shape
    assert S <= max_len

    out_dtype = jnp.dtype(x.dtype if out_dtype is None else out_dtype)
    # bf16 FMA is native on v6e/v7x; keep f32 otherwise (and for parity tests).
    compute_dtype = jnp.dtype(jnp.bfloat16) if out_dtype == jnp.dtype(jnp.bfloat16) \
        else jnp.dtype(jnp.float32)
    c_item = compute_dtype.itemsize
    o_item = out_dtype.itemsize

    scale = math.sqrt(float(D))
    # (x @ W.T + b) * sqrt(D) + pe  ==  x * (W*sqrt(D)) + (pe + b*sqrt(D))
    w_scaled = (enc_w.reshape(1, D).astype(jnp.float32) * scale).astype(compute_dtype)
    pe_b = (pe[:S].astype(jnp.float32)
            + enc_b.reshape(1, D).astype(jnp.float32) * scale).astype(compute_dtype)

    cap = _vmem_capacity_bytes()
    budget = int(cap * 0.75)                    # leave headroom for compiler scratch
    target_tile_bytes = max(budget // 8, 1 << 20)   # ~12 MiB @128 MiB VMEM, ~6 MiB on v7x

    dense3d = (D % 128 == 0) and (B % 8 == 0)

    if dense3d:
        # ---- aligned path: 3-D (tS, B, D) output blocks are already dense ----
        x2 = x[:, :, 0].astype(compute_dtype)                       # (S, B)
        if seq_block is None:
            seq_block = target_tile_bytes // max(B * D * o_item, 1)
        seq_block = max(8, (int(seq_block) // 8) * 8)
        seq_block = min(seq_block, _round_up(S, 8))
        if seq_block >= S and S > 8:                                # feed both v7x TCs
            seq_block = _round_up(pl.cdiv(S, 2), 8)
        grid = (pl.cdiv(S, seq_block),)

        vmem_need = (2 * seq_block * (B * c_item + D * c_item + B * D * o_item)
                     + D * c_item + (2 << 20))
        vmem_limit = int(min(int(cap * 0.9), max(vmem_need, 16 << 20)))

        cost = pl.CostEstimate(
            flops=2 * S * B * D, transcendentals=0,
            bytes_accessed=S * B * c_item + S * D * c_item + D * c_item + S * B * D * o_item)

        return pl.pallas_call(
            _fma_kernel_3d,
            out_shape=jax.ShapeDtypeStruct((S, B, D), out_dtype),
            grid_spec=pltpu.PrefetchScalarGridSpec(
                num_scalar_prefetch=0,
                grid=grid,
                in_specs=[
                    pl.BlockSpec((seq_block, B), lambda i: (i, 0)),      # x values
                    pl.BlockSpec((1, D), lambda i: (0, 0)),              # W * sqrt(D)
                    pl.BlockSpec((seq_block, D), lambda i: (i, 0)),      # pe + b*sqrt(D)
                ],
                out_specs=pl.BlockSpec((seq_block, B, D), lambda i: (i, 0, 0)),
            ),
            compiler_params=pltpu.CompilerParams(
                dimension_semantics=("parallel",),
                vmem_limit_bytes=vmem_limit,
            ),
            cost_estimate=cost,
        )(x2, w_scaled, pe_b)

    # ---- general path: emit a dense 2-D (S*B, D) slab (unmasked stores) ----
    R = S * B
    x_flat = x.reshape(R, 1).astype(compute_dtype)                  # row r = s*B + b
    # pe rows repeated per batch element; reads (B-1)x extra pe bytes but keeps the
    # dominant store path fully lane/sublane-dense for small B / D.
    pe_flat = jnp.repeat(pe_b, B, axis=0)                           # (R, D)

    if seq_block is None:
        row_block = target_tile_bytes // max(D * o_item, 1)
    else:
        row_block = int(seq_block) * B
    row_block = max(8, (int(row_block) // 8) * 8)
    row_block = min(row_block, _round_up(R, 8))
    if row_block >= R and R > 8:                                    # feed both v7x TCs
        row_block = _round_up(pl.cdiv(R, 2), 8)
    grid = (pl.cdiv(R, row_block),)

    vmem_need = (2 * row_block * (c_item + D * c_item + D * o_item)
                 + D * c_item + (2 << 20))
    vmem_limit = int(min(int(cap * 0.9), max(vmem_need, 16 << 20)))

    cost = pl.CostEstimate(
        flops=2 * R * D, transcendentals=0,
        bytes_accessed=R * c_item + R * D * c_item + D * c_item + R * D * o_item)

    out2 = pl.pallas_call(
        _fma_kernel_2d,
        out_shape=jax.ShapeDtypeStruct((R, D), out_dtype),
        grid_spec=pltpu.PrefetchScalarGridSpec(
            num_scalar_prefetch=0,
            grid=grid,
            in_specs=[
                pl.BlockSpec((row_block, 1), lambda i: (i, 0)),          # x values
                pl.BlockSpec((1, D), lambda i: (0, 0)),                  # W * sqrt(D)
                pl.BlockSpec((row_block, D), lambda i: (i, 0)),          # pe + b*sqrt(D)
            ],
            out_specs=pl.BlockSpec((row_block, D), lambda i: (i, 0)),
        ),
        compiler_params=pltpu.CompilerParams(
            dimension_semantics=("parallel",),
            vmem_limit_bytes=vmem_limit,
        ),
        cost_estimate=cost,
    )(x_flat, w_scaled, pe_flat)

    # Same row-major memory; the reshape outside pallas_call is free metadata.
    return out2.reshape(S, B, D)

    # TODO(synk): training-mode nn.Dropout would need pltpu.prng_seed/prng_random_bits
    # masking in-kernel; eval-mode (identity) semantics are reproduced here.


if __name__ == "__main__":
    # N_HEAD / NUM_LAYERS belong to the TransformerEncoder stack (not covered by
    # this kernel, see TODO below); listed for completeness.
    config = {"D_MODEL": 32, "N_HEAD": 4, "NUM_LAYERS": 2,
              "DROPOUT": 0.1, "DECAY_RATE": 0.01}

    def reference(x, w, b, pe):
        h = jnp.einsum("sbi,di->sbd", x, w) + b
        return h * jnp.sqrt(jnp.float32(w.shape[0])) + pe[: x.shape[0]][:, None, :]

    # --- small / unaligned config (exercises the lane-dense 2-D output path) ---
    S, B, D = 8, 2, config["D_MODEL"]
    key = jax.random.PRNGKey(0)
    k_x, k_w, k_b = jax.random.split(key, 3)
    x = jax.random.normal(k_x, (S, B, 1), dtype=jnp.float32)          # raw series input
    enc_w = jax.random.normal(k_w, (D, 1), dtype=jnp.float32) * 0.1   # nn.Linear(1, D).weight
    enc_b = jax.random.normal(k_b, (D,), dtype=jnp.float32) * 0.1     # nn.Linear(1, D).bias
    pe = build_pe_table(D, config["DECAY_RATE"])                      # (5000, D)

    out = jax.block_until_ready(encoder_posenc_forward(x, enc_w, enc_b, pe))
    ref = reference(x, enc_w, enc_b, pe)
    assert out.shape == (S, B, D)
    np.testing.assert_allclose(np.asarray(out), np.asarray(ref), rtol=1e-5, atol=1e-5)

    # --- bf16 output (what the downstream attention/FFN MXU kernels consume) ---
    out_bf16 = jax.block_until_ready(
        encoder_posenc_forward(x, enc_w, enc_b, pe, out_dtype=jnp.bfloat16))
    np.testing.assert_allclose(np.asarray(out_bf16, dtype=np.float32), np.asarray(ref),
                               rtol=5e-2, atol=5e-2)

    # --- aligned config (B % 8 == 0, D % 128 == 0: dense 3-D output path) ---
    S2, B2, D2 = 16, 8, 128
    k_x2, k_w2, k_b2 = jax.random.split(jax.random.PRNGKey(1), 3)
    x2 = jax.random.normal(k_x2, (S2, B2, 1), dtype=jnp.float32)
    w2 = jax.random.normal(k_w2, (D2, 1), dtype=jnp.float32) * 0.1
    b2 = jax.random.normal(k_b2, (D2,), dtype=jnp.float32) * 0.1
    pe2 = build_pe_table(D2, config["DECAY_RATE"])
    out2 = jax.block_until_ready(encoder_posenc_forward(x2, w2, b2, pe2))
    ref2 = reference(x2, w2, b2, pe2)
    assert out2.shape == (S2, B2, D2)
    np.testing.assert_allclose(np.asarray(out2), np.asarray(ref2), rtol=1e-5, atol=1e-5)

    # TODO(synk): the nn.TransformerEncoder stack (MHA + FFN + LayerNorms) and the
    # final Linear(d_model, 1) head are not implemented here; they would be
    # separate MXU matmul / flash-attention Pallas kernels.
    print("KERNEL_OK")
</pallas_src>

<mosaic_0001>
module attributes {stable_mosaic.version = 11 : i64} {
  func.func @_fma_kernel_2d(%arg0: i32, %arg1: memref<8x1xf32, #tpu.memory_space<vmem>>, %arg2: memref<1x32xf32, #tpu.memory_space<vmem>>, %arg3: memref<8x32xf32, #tpu.memory_space<vmem>>, %arg4: memref<8x32xf32, #tpu.memory_space<vmem>>) attributes {dimension_semantics = [#tpu.dimension_semantics<parallel>], iteration_bounds = array<i64: 2>, scalar_prefetch = 0 : i64, scratch_operands = 0 : i64, tpu.core_type = #tpu.core_type<tc>, window_params = [{transform_indices = @transform_0, window_bounds = array<i64: 8, 1>}, {pipeline_mode = #tpu.pipeline_mode<synchronous>, transform_indices = @transform_1, window_bounds = array<i64: 1, 32>}, {transform_indices = @transform_2, window_bounds = array<i64: 8, 32>}, {transform_indices = @transform_3, window_bounds = array<i64: 8, 32>}]} {
    %c0 = arith.constant 0 : index
    %c0_0 = arith.constant 0 : index
    %0 = vector.load %arg1[%c0, %c0_0] : memref<8x1xf32, #tpu.memory_space<vmem>>, vector<8x1xf32>
    %c0_1 = arith.constant 0 : index
    %c0_2 = arith.constant 0 : index
    %1 = vector.load %arg2[%c0_1, %c0_2] : memref<1x32xf32, #tpu.memory_space<vmem>>, vector<1x32xf32>
    %2 = vector.broadcast %0 : vector<8x1xf32> to vector<8x32xf32>
    %3 = vector.broadcast %1 : vector<1x32xf32> to vector<8x32xf32>
    %4 = arith.mulf %2, %3 : vector<8x32xf32>
    %c0_3 = arith.constant 0 : index
    %c0_4 = arith.constant 0 : index
    %5 = vector.load %arg3[%c0_3, %c0_4] : memref<8x32xf32, #tpu.memory_space<vmem>>, vector<8x32xf32>
    %6 = arith.addf %4, %5 : vector<8x32xf32>
    %c0_5 = arith.constant 0 : index
    %c0_6 = arith.constant 0 : index
    %7 = vector.load %arg4[%c0_5, %c0_6] : memref<8x32xf32, #tpu.memory_space<vmem>>, vector<8x32xf32>
    tpu.vector_store %arg4[%c0_5, %c0_6], %6 {strides = array<i32>} : memref<8x32xf32, #tpu.memory_space<vmem>>, vector<8x32xf32>,
    return
  }
  func.func @transform_0(%arg0: i32) -> (i32, i32) {
    %c0_i32 = arith.constant 0 : i32
    %c0_i32_0 = arith.constant 0 : i32
    return %arg0, %c0_i32 : i32, i32
  }
  func.func @transform_1(%arg0: i32) -> (i32, i32) {
    %c0_i32 = arith.constant 0 : i32
    %c0_i32_0 = arith.constant 0 : i32
    %c0_i32_1 = arith.constant 0 : i32
    return %c0_i32, %c0_i32_0 : i32, i32
  }
  func.func @transform_2(%arg0: i32) -> (i32, i32) {
    %c0_i32 = arith.constant 0 : i32
    %c0_i32_0 = arith.constant 0 : i32
    return %arg0, %c0_i32 : i32, i32
  }
  func.func @transform_3(%arg0: i32) -> (i32, i32) {
    %c0_i32 = arith.constant 0 : i32
    %c0_i32_0 = arith.constant 0 : i32
    return %arg0, %c0_i32 : i32, i32
  }
}

</mosaic_0001>

<llo_original>
// kernel: tpu_custom_call.1
$region0: #{tpu_custom_call.1}
  #allocation0 [shape = 'u32[]', space=smem, size = 0x4, offset = 0x4, fixed_abs, tag = 'smem constant byte address 0x4 - core index']
  #allocation1 [shape = 'u32[144,128]{1,0:T(1,128)}', space=vmem, size = 0x12000, scoped, tag = 'internal scratch']
  %s0 = inlined_call_operand.vmem [shape: f32[16,1], index: 0, kind: input, shape index: {}]
  %s1 = inlined_call_operand.vmem [shape: f32[1,32], index: 1, kind: input, shape index: {}]
  %s2 = inlined_call_operand.vmem [shape: f32[16,32], index: 2, kind: input, shape index: {}]
  %s3 = inlined_call_operand.hbm [shape: f32[16,32], index: 3, kind: output, shape index: {}]
  %s4 = sld [smem:[#allocation0]]
  $region45: #{tpu_custom_call.1} parent=0
    _
  %s6 = ssub.s32 1, %s4
  %s7 = scalar_select 0, %s6, %s4
  $region1: #{tpu_custom_call.1} parent=0
    #allocation2 [shape = 'u8[8192]{0}', space=vmem, size = 0x2000, scoped, tag = 'output window, operand 0']
    #allocation3 [shape = 's32[2]{0}', space=sflag, size = 0x8, scoped, tag = 'scoped memory for tpu_custom_call.1']
    %8 = vsyncpa [#allocation3], 0
    %s9 = scalar_lea.sflag [#allocation3], 1
    %10 = vsyncpa %s9, 0
    loop: start=0, step=1, limit=4
    $region2: #{tpu_custom_call.1} parent=1 // loop_pre_header
      _
    $region3: #{tpu_custom_call.1} parent=1 // loop_header
      %s12 = sphi 0, %s16
      %p13 = scmp.ge.s32.totalorder %s12, 4
      %s22 = sphi 0, %s24
      %s25 = sphi 0, %s22
      %s26 = sphi 0, %s25
      %s42 = sphi 0, %s26
      %s46 = sphi 0, %s46
      %s48 = sphi 0, %s46
      %s49 = sphi 0, %s48
      %s63 = sphi 0, %s49
      %s69 = sphi 0, %s71
      %s72 = sphi 0, %s69
      %s73 = sphi 0, %s72
      %s89 = sphi 0, %s73
      %s95 = sphi 0, %s97
      %s98 = sphi 0, %s95
      %s99 = sphi 0, %s98
      %s115 = sphi 0, %s99
    $region4: #{tpu_custom_call.1} parent=1 // loop_header_branch
      %15 = sbr.rel (%p13) target = $region8
    $region5: #{tpu_custom_call.1} parent=1 // loop_body
      %s17 = ssub.s32 %s12, 1
      %s18 = ssub.s32 %s12, 2
      %s19 = sadd.s32 %s12, 1
      %s20 = ssub.s32 %s12, %s19
      %p21 = scmp.eq.s32.totalorder %s20, 0
      %s23 = sadd.s32 %s22, 1
      %s24 = scalar_select %p21, %s22, %s23
      %p27 = pneg %p21
      %p28 = scmp.eq.s32.totalorder %s12, 1
      %p29 = por %p27, %p28
      %p30 = scmp.ne.s32.totalorder %s22, %s25
      %p31 = scmp.eq.s32.totalorder %s12, 0
      %p32 = por %p30, %p31
      %p33 = scmp.ne.s32.totalorder %s22, %s25
      %p34 = scmp.eq.s32.totalorder %s17, 1
      %p35 = por %p33, %p34
      %p36 = scmp.ne.s32.totalorder %s25, %s26
      %p37 = scmp.eq.s32.totalorder %s17, 0
      %p38 = por %p36, %p37
      %p39 = scmp.ne.s32.totalorder %s25, %s26
      %p40 = scmp.eq.s32.totalorder %s18, 1
      %p41 = por %p39, %p40
      %p43 = scmp.ne.s32.totalorder %s26, %s42
      %p44 = scmp.eq.s32.totalorder %s18, 0
      %p45 = por %p43, %p44
      %s47 = sadd.s32 %s46, 1
      %p50 = scmp.eq.s32.totalorder %s12, 1
      %p51 = scmp.ne.s32.totalorder %s46, %s48
      %p52 = scmp.eq.s32.totalorder %s12, 0
      %p53 = por %p51, %p52
      %p54 = scmp.ne.s32.totalorder %s46, %s48
      %p55 = scmp.eq.s32.totalorder %s17, 1
      %p56 = por %p54, %p55
      %p57 = scmp.ne.s32.totalorder %s48, %s49
      %p58 = scmp.eq.s32.totalorder %s17, 0
      %p59 = por %p57, %p58
      %p60 = scmp.ne.s32.totalorder %s48, %s49
      %p61 = scmp.eq.s32.totalorder %s18, 1
      %p62 = por %p60, %p61
      %p64 = scmp.ne.s32.totalorder %s49, %s63
      %p65 = scmp.eq.s32.totalorder %s18, 0
      %p66 = por %p64, %p65
      %s67 = ssub.s32 %s12, %s19
      %p68 = scmp.eq.s32.totalorder %s67, 0
      %s70 = sadd.s32 %s69, 1
      %s71 = scalar_select %p68, %s69, %s70
      %p74 = pneg %p68
      %p75 = scmp.eq.s32.totalorder %s12, 1
      %p76 = por %p74, %p75
      %p77 = scmp.ne.s32.totalorder %s69, %s72
      %p78 = scmp.eq.s32.totalorder %s12, 0
      %p79 = por %p77, %p78
      %p80 = scmp.ne.s32.totalorder %s69, %s72
      %p81 = scmp.eq.s32.totalorder %s17, 1
      %p82 = por %p80, %p81
      %p83 = scmp.ne.s32.totalorder %s72, %s73
      %p84 = scmp.eq.s32.totalorder %s17, 0
      %p85 = por %p83, %p84
      %p86 = scmp.ne.s32.totalorder %s72, %s73
      %p87 = scmp.eq.s32.totalorder %s18, 1
      %p88 = por %p86, %p87
      %p90 = scmp.ne.s32.totalorder %s73, %s89
      %p91 = scmp.eq.s32.totalorder %s18, 0
      %p92 = por %p90, %p91
      %s93 = ssub.s32 %s12, %s19
      %p94 = scmp.eq.s32.totalorder %s93, 0
      %s96 = sadd.s32 %s95, 1
      %s97 = scalar_select %p94, %s95, %s96
      %p100 = pneg %p94
      %p101 = scmp.eq.s32.totalorder %s12, 1
      %p102 = por %p100, %p101
      %p103 = scmp.ne.s32.totalorder %s95, %s98
      %p104 = scmp.eq.s32.totalorder %s12, 0
      %p105 = por %p103, %p104
      %p106 = scmp.ne.s32.totalorder %s95, %s98
      %p107 = scmp.eq.s32.totalorder %s17, 1
      %p108 = por %p106, %p107
      %p109 = scmp.ne.s32.totalorder %s98, %s99
      %p110 = scmp.eq.s32.totalorder %s17, 0
      %p111 = por %p109, %p110
      %p112 = scmp.ne.s32.totalorder %s98, %s99
      %p113 = scmp.eq.s32.totalorder %s18, 1
      %p114 = por %p112, %p113
      %p116 = scmp.ne.s32.totalorder %s99, %s115
      %p117 = scmp.eq.s32.totalorder %s18, 0
      %p118 = por %p116, %p117
      %p119 = scmp.le.s32.totalorder 1, %s12
      %p120 = scmp.lt.s32.totalorder %s12, 3
      %p121 = pnand %p119, %p120
      %p122 = pneg %p121
      // Predicated region
      $region9: #{tpu_custom_call.1} parent=5 // pred_check
        _
      $region10: #{tpu_custom_call.1} parent=5 // pred_check_branch
        %124 = sbr.rel (%p121) target = $region12
      $region11: #{tpu_custom_call.1} parent=5 // pred_region
        %s125 = ssub.s32 %s12, 1
        // Predicated region
        $region13: #{tpu_custom_call.1} parent=11 // pred_check
          %p126 = pneg %p59
        $region14: #{tpu_custom_call.1} parent=11 // pred_check_branch
          %128 = sbr.rel (%p126) target = $region16
        $region15: #{tpu_custom_call.1} parent=11 // pred_region
          _
        $region16: #{tpu_custom_call.1} parent=11 // pred_fallthru
          _
      $region12: #{tpu_custom_call.1} parent=5 // pred_fallthru
        _
      %p129 = scmp.lt.s32.totalorder %s12, 2
      // Predicated region
      $region17: #{tpu_custom_call.1} parent=5 // pred_check
        %p130 = pneg %p129
      $region18: #{tpu_custom_call.1} parent=5 // pred_check_branch
        %132 = sbr.rel (%p130) target = $region20
      $region19: #{tpu_custom_call.1} parent=5 // pred_region
        // Predicated region
        $region21: #{tpu_custom_call.1} parent=19 // pred_check
          %p133 = pneg %p32
        $region22: #{tpu_custom_call.1} parent=19 // pred_check_branch
          %135 = sbr.rel (%p133) target = $region24
        $region23: #{tpu_custom_call.1} parent=19 // pred_region
          %p136 = scmp.lt.s32.totalorder %s12, 1
          %s137 = scalar_select %p136, %s12, 1
          %s138 = smul.addr %s137, 8
          %s139 = scalar_lea.vmem %s0, %s138
        $region24: #{tpu_custom_call.1} parent=19 // pred_fallthru
          _
        // Predicated region
        $region25: #{tpu_custom_call.1} parent=19 // pred_check
          %p140 = pneg %p79
        $region26: #{tpu_custom_call.1} parent=19 // pred_check_branch
          %142 = sbr.rel (%p140) target = $region28
        $region27: #{tpu_custom_call.1} parent=19 // pred_region
          %p143 = scmp.lt.s32.totalorder %s12, 1
          %s144 = scalar_select %p143, %s12, 1
          %s145 = smul.addr %s144, 8
          %s146 = scalar_lea.vmem %s2, %s145
        $region28: #{tpu_custom_call.1} parent=19 // pred_fallthru
          _
      $region20: #{tpu_custom_call.1} parent=5 // pred_fallthru
        _
      %p147 = scmp.le.s32.totalorder 1, %s12
      %p148 = scmp.lt.s32.totalorder %s12, 3
      %p149 = pnand %p147, %p148
      %p150 = pneg %p149
      // Predicated region
      $region29: #{tpu_custom_call.1} parent=5 // pred_check
        _
      $region30: #{tpu_custom_call.1} parent=5 // pred_check_branch
        %152 = sbr.rel (%p149) target = $region32
      $region31: #{tpu_custom_call.1} parent=5 // pred_region
        %s153 = ssub.s32 %s12, 1
        %p154 = scmp.lt.s32.totalorder %s17, 1
        %s155 = scalar_select %p154, %s17, 1
        %s156 = smul.addr %s155, 8
        %s157 = scalar_lea.vmem %s0, %s156
        %p158 = pneg %p38
        %p159 = pneg %p35
        %p160 = pneg %p59
        %p161 = pneg %p56
        %p162 = scmp.lt.s32.totalorder %s17, 1
        %s163 = scalar_select %p162, %s17, 1
        %s164 = smul.addr %s163, 8
        %s165 = scalar_lea.vmem %s2, %s164
        %p166 = pneg %p85
        %p167 = pneg %p82
        %p168 = pneg %p111
        %p169 = pneg %p108
        %s170 = sand.u32 %s98, 1
        %s171 = scalar_lea.sflag [#allocation3], %s170
        %s172 = sand.u32 %s98, 1
        %s173 = smul.addr %s172, 8
        %s174 = scalar_lea.vmem [#allocation2], %s173
        %p175 = scmp.lt.s32.totalorder %s17, 1
        %s176 = scalar_select %p175, %s17, 1
        %s177 = smul.addr %s176, 8
        %s178 = scalar_lea.vmem %s0, %s177
        %p179 = scmp.lt.s32.totalorder %s17, 1
        %s180 = scalar_select %p179, %s17, 1
        %s181 = smul.addr %s180, 8
        %s182 = scalar_lea.vmem %s2, %s181
        %v183 = vld [vmem:[%s178] sm:$0xff]
        %v184 = vld [vmem:[%s1] sm:$0x1]
        %186 = vset.pattern.permute.xlu0 0
        %187 = vperm.xlu0 %186, %v183
        %v188 = vpop.permute.xlu0 %187
        %v191 = vlaneseq
        %v192 = vshrl.u32 %v191, 7
        %v193 = vsub.s32 0, %v192
        %v194 = vrot.slane %v184, %v193
        %v196 = vmul.f32 %v188, %v194
        %v197 = vld [vmem:[%s182] sm:$0xff]
        %v198 = vadd.f32 %v196, %v197
        %vm199 = vcmask 261120
        %200 = vst.msk [vmem:[%s174] sm:$0xff] %vm199, %v198
        %s201 = sand.u32 %s98, 1
        %s202 = scalar_lea.sflag [#allocation3], %s201
        %s203 = sand.u32 %s98, 1
        %s204 = smul.addr %s203, 8
        %s205 = scalar_lea.vmem [#allocation2], %s204
        // Predicated region
        $region33: #{tpu_custom_call.1} parent=31 // pred_check
          %p206 = pneg %p108
        $region34: #{tpu_custom_call.1} parent=31 // pred_check_branch
          %208 = sbr.rel (%p206) target = $region36
        $region35: #{tpu_custom_call.1} parent=31 // pred_region
          %s210 = ssub.s32 128, 128
          %211 = vsyncadd %s202, %s210
          %s212 = smul.addr %s17, 128
          %s213 = scalar_lea.hbm %s3, %s212
          %s215 = sshll.u32 %s205, 4
          %s216 = int_to_ptr.vmem [resolvable:$true] %s215
          %218 = dma.vmem_to_hbm [thread:$0]  %s216, 128, %s213, %s202
        $region36: #{tpu_custom_call.1} parent=31 // pred_fallthru
          _
      $region32: #{tpu_custom_call.1} parent=5 // pred_fallthru
        _
      %p219 = scmp.le.s32.totalorder 2, %s12
      // Predicated region
      $region37: #{tpu_custom_call.1} parent=5 // pred_check
        %p220 = pneg %p219
      $region38: #{tpu_custom_call.1} parent=5 // pred_check_branch
        %222 = sbr.rel (%p220) target = $region40
      $region39: #{tpu_custom_call.1} parent=5 // pred_region
        %s223 = ssub.s32 %s12, 2
        // Predicated region
        $region41: #{tpu_custom_call.1} parent=39 // pred_check
          %p224 = pneg %p114
        $region42: #{tpu_custom_call.1} parent=39 // pred_check_branch
          %226 = sbr.rel (%p224) target = $region44
        $region43: #{tpu_custom_call.1} parent=39 // pred_region
          %s227 = sand.u32 %s99, 1
          %s228 = scalar_lea.sflag [#allocation3], %s227
          %s229 = sand.u32 %s99, 1
          %s230 = smul.addr %s229, 8
          %s231 = scalar_lea.vmem [#allocation2], %s230
          %232 = dma.done %s228, 128
        $region44: #{tpu_custom_call.1} parent=39 // pred_fallthru
          _
      $region40: #{tpu_custom_call.1} parent=5 // pred_fallthru
        _
    $region6: #{tpu_custom_call.1} parent=1 // loop_footer
      %s16 = sadd.s32 1, %s12
    $region7: #{tpu_custom_call.1} parent=1 // loop_footer_branch
      %11 = sbr.rel target = $region3
    $region8: #{tpu_custom_call.1} parent=1 // loop_exit
      _
    %233 = vsyncpa [#allocation3], 1
    %s234 = scalar_lea.sflag [#allocation3], 1
    %235 = vsyncpa %s234, 1

</llo_original>
